<compile_context>
chip_gen: v7x
topology: tpu7x:2x2x1
jax: 0.10.0
libtpu: 0.0.40
codegen_flags: <defaults>
</compile_context>

<pallas_src>
import jax
import jax.numpy as jnp
from jax.experimental import pallas as pl
from jax.experimental.pallas import tpu as pltpu


def _copy_kernel(x_ref, o_ref):
    # Pure lane-dense identity copy of one (R, TC) tile.  The reshape has
    # already happened (for free) in the wrapper, so there is no in-kernel
    # relayout crossing (8, 128) vreg tiles.
    o_ref[...] = x_ref[...]


def _choose_col_tile(flat):
    """Lane tile: multiple of 128 in the 128..2048 range, or the full dim."""
    if flat % 128 != 0 or flat <= 128:
        # Full-extent last dim is always a legal block shape.
        return flat
    for tc in (2048, 1024, 512, 256, 128):
        if flat % tc == 0:
            return tc
    return 128  # unreachable since flat % 128 == 0


def _choose_row_tile(n, col_tile, itemsize):
    """Sublane tile: multiple of 8 (or full N), capped so the tile is ~2 MiB."""
    if n <= 8:
        return n  # full-extent second-to-last dim is legal
    max_rows_by_vmem = max(8, (2 * 1024 * 1024) // max(1, col_tile * itemsize))
    r = min(n, max_rows_by_vmem)
    return max(8, (r // 8) * 8)


def _copy_2d_pallas(x2):
    """Lane-dense tiled HBM->VMEM->HBM copy of a 2D array via Pallas."""
    n, flat = x2.shape
    itemsize = jnp.dtype(x2.dtype).itemsize

    tc = _choose_col_tile(flat)
    tr = _choose_row_tile(n, tc, itemsize)

    grid = (pl.cdiv(n, tr), pl.cdiv(flat, tc))

    # Double-buffered input + output tiles, plus headroom; safe on all chips
    # (v7x scoped default is 32 MiB of 64 MiB physical).
    tile_bytes = tr * tc * itemsize
    vmem_limit = min(max(8 * tile_bytes, 16 * 1024 * 1024), 48 * 1024 * 1024)

    return pl.pallas_call(
        _copy_kernel,
        out_shape=jax.ShapeDtypeStruct((n, flat), x2.dtype),
        grid=grid,
        in_specs=[pl.BlockSpec((tr, tc), lambda i, j: (i, j))],
        out_specs=pl.BlockSpec((tr, tc), lambda i, j: (i, j)),
        compiler_params=pltpu.CompilerParams(
            dimension_semantics=("parallel", "parallel"),
            vmem_limit_bytes=vmem_limit,
        ),
    )(x2)


def flatten_pallas(x, keep_channel=False):
    """Pallas equivalent of Flatten(keep_channel).forward(x) for NCHW input.

    NOTE: for a contiguous NCHW input this whole op could be the free XLA
    reshape alone; the Pallas copy is kept as the fuse-ready hot path, with
    all reshapes done outside the kernel where they are metadata-only.
    """
    N, C, H, W = x.shape
    flat = C * H * W

    # Free, metadata-only reshape to a lane-dense 2D slab.
    x2 = x.reshape(N, flat)

    out2 = _copy_2d_pallas(x2)

    if keep_channel:
        # Free reshape of the lane-dense result; no 3D sublane-padded
        # output blocks / masked stores inside the kernel.
        return out2.reshape(N, C, H * W)
    return out2


if __name__ == "__main__":
    key = jax.random.PRNGKey(0)
    N, C, H, W = 2, 4, 16, 16
    x = jax.random.normal(key, (N, C, H, W), dtype=jnp.float32)

    # keep_channel=False: (N, C*H*W)
    y_flat = flatten_pallas(x, keep_channel=False)
    jax.block_until_ready(y_flat)
    ref_flat = jnp.reshape(x, (N, -1))
    assert y_flat.shape == (N, C * H * W), y_flat.shape
    assert y_flat.dtype == x.dtype
    assert jnp.array_equal(y_flat, ref_flat), "keep_channel=False mismatch"

    # keep_channel=True: (N, C, H*W)
    y_keep = flatten_pallas(x, keep_channel=True)
    jax.block_until_ready(y_keep)
    ref_keep = jnp.reshape(x, (N, C, -1))
    assert y_keep.shape == (N, C, H * W), y_keep.shape
    assert y_keep.dtype == x.dtype
    assert jnp.array_equal(y_keep, ref_keep), "keep_channel=True mismatch"

    print("KERNEL_OK")
</pallas_src>

<mosaic_0001>
module attributes {stable_mosaic.version = 11 : i64} {
  func.func @_copy_kernel(%arg0: i32, %arg1: i32, %arg2: memref<2x1024xf32, #tpu.memory_space<vmem>>, %arg3: memref<2x1024xf32, #tpu.memory_space<vmem>>) attributes {dimension_semantics = [#tpu.dimension_semantics<parallel>, #tpu.dimension_semantics<parallel>], iteration_bounds = array<i64: 1, 1>, scalar_prefetch = 0 : i64, scratch_operands = 0 : i64, tpu.core_type = #tpu.core_type<tc>, window_params = [{transform_indices = @transform_0, window_bounds = array<i64: 2, 1024>}, {transform_indices = @transform_1, window_bounds = array<i64: 2, 1024>}]} {
    %c0 = arith.constant 0 : index
    %c0_0 = arith.constant 0 : index
    %0 = vector.load %arg2[%c0, %c0_0] : memref<2x1024xf32, #tpu.memory_space<vmem>>, vector<2x1024xf32>
    %c0_1 = arith.constant 0 : index
    %c0_2 = arith.constant 0 : index
    %1 = vector.load %arg3[%c0_1, %c0_2] : memref<2x1024xf32, #tpu.memory_space<vmem>>, vector<2x1024xf32>
    tpu.vector_store %arg3[%c0_1, %c0_2], %0 {strides = array<i32>} : memref<2x1024xf32, #tpu.memory_space<vmem>>, vector<2x1024xf32>,
    return
  }
  func.func @transform_0(%arg0: i32, %arg1: i32) -> (i32, i32) {
    %c0_i32 = arith.constant 0 : i32
    return %arg0, %arg1 : i32, i32
  }
  func.func @transform_1(%arg0: i32, %arg1: i32) -> (i32, i32) {
    %c0_i32 = arith.constant 0 : i32
    return %arg0, %arg1 : i32, i32
  }
}

</mosaic_0001>

<llo_original>
// kernel: tpu_custom_call.1
$region0: #{tpu_custom_call.1}
  #allocation0 [shape = 'u32[]', space=smem, size = 0x4, offset = 0x4, fixed_abs, tag = 'smem constant byte address 0x4 - core index']
  #allocation1 [shape = 'u32[144,128]{1,0:T(1,128)}', space=vmem, size = 0x12000, scoped, tag = 'internal scratch']
  %s0 = inlined_call_operand.hbm [shape: f32[2,1024], index: 0, kind: input, shape index: {}]
  %s1 = inlined_call_operand.hbm [shape: f32[2,1024], index: 1, kind: output, shape index: {}]
  %s2 = sld [smem:[#allocation0]]
  $region18: #{tpu_custom_call.1} parent=0
    _
  %s4 = ssub.s32 1, %s2
  %s5 = scalar_select 0, %s4, %s2
  $region1: #{tpu_custom_call.1} parent=0
    #allocation2 [shape = 'u8[8192]{0}', space=vmem, size = 0x2000, scoped, tag = 'input window, operand 0, single buffered']
    #allocation3 [shape = 's32[1]{0}', space=sflag, size = 0x4, scoped, tag = 'scoped memory for tpu_custom_call.1']
    #allocation4 [shape = 's32[1]{0}', space=sflag, size = 0x4, scoped, tag = 'scoped memory for tpu_custom_call.1']
    #allocation5 [shape = 'u8[8192]{0}', space=vmem, size = 0x2000, scoped, tag = 'output window, operand 0, single buffered']
    %6 = vsyncpa [#allocation3], 0
    %7 = vsyncpa [#allocation4], 0
    // Predicated region
    $region2: #{tpu_custom_call.1} parent=1 // pred_check
      _
    $region3: #{tpu_custom_call.1} parent=1 // pred_check_branch
      %9 = sbr.rel (0) target = $region5
    $region4: #{tpu_custom_call.1} parent=1 // pred_region
      %s11 = ssub.s32 256, 256
      %12 = vsyncadd [#allocation3], %s11
      %s14 = sshll.u32 [#allocation2], 4
      %s15 = int_to_ptr.vmem [resolvable:$true] %s14
      %17 = dma.hbm_to_vmem [thread:$0]  %s0, 256, %s15, [#allocation3]
    $region5: #{tpu_custom_call.1} parent=1 // pred_fallthru
      _
    // Predicated region
    $region6: #{tpu_custom_call.1} parent=1 // pred_check
      _
    $region7: #{tpu_custom_call.1} parent=1 // pred_check_branch
      %19 = sbr.rel (0) target = $region9
    $region8: #{tpu_custom_call.1} parent=1 // pred_region
      %20 = dma.done [#allocation3], 256
    $region9: #{tpu_custom_call.1} parent=1 // pred_fallthru
      _
    %v21 = vld [vmem:[#allocation2] sm:$0xff]
    %v22 = vld [vmem:[#allocation2 + $0x8] sm:$0xff]
    %23 = vst [vmem:[#allocation5] sm:$0xff] %v21
    %24 = vst [vmem:[#allocation5 + $0x8] sm:$0xff] %v22
    // Predicated region
    $region10: #{tpu_custom_call.1} parent=1 // pred_check
      _
    $region11: #{tpu_custom_call.1} parent=1 // pred_check_branch
      %26 = sbr.rel (0) target = $region13
    $region12: #{tpu_custom_call.1} parent=1 // pred_region
      %s28 = ssub.s32 256, 256
      %29 = vsyncadd [#allocation4], %s28
      %s31 = sshll.u32 [#allocation5], 4
      %s32 = int_to_ptr.vmem [resolvable:$true] %s31
      %34 = dma.vmem_to_hbm [thread:$0]  %s32, 256, %s1, [#allocation4]
    $region13: #{tpu_custom_call.1} parent=1 // pred_fallthru
      _
    // Predicated region
    $region14: #{tpu_custom_call.1} parent=1 // pred_check
      _
    $region15: #{tpu_custom_call.1} parent=1 // pred_check_branch
      %36 = sbr.rel (0) target = $region17
    $region16: #{tpu_custom_call.1} parent=1 // pred_region
      %37 = dma.done [#allocation4], 256
    $region17: #{tpu_custom_call.1} parent=1 // pred_fallthru
      _
    %38 = vsyncpa [#allocation3], 1
    %39 = vsyncpa [#allocation4], 1

</llo_original>
